<compile_context>
chip_gen: v6e
topology: v6e:2x2x1
jax: 0.10.0
libtpu: 0.0.40
codegen_flags: <defaults>
</compile_context>

<pallas_src>
import functools

import jax
import jax.numpy as jnp
from jax import lax
from jax.experimental import pallas as pl
from jax.experimental.pallas import tpu as pltpu

INPUT_DIM = 4
NPAIRS = INPUT_DIM * (INPUT_DIM - 1) // 2          # 6
HIDDEN = 16
COMB = INPUT_DIM + NPAIRS                          # 10
# EPS also protects the all-zero padded tail lanes (variance == 0) from
# producing inf/NaN before they are sliced off -- do not remove it.
EPS = 1e-5
PAIR_IDX = [(i, j) for i in range(INPUT_DIM) for j in range(i + 1, INPUT_DIM)]


def _coupling_kernel(x_ref, wpair_ref, wfuse_ref, o_ref, *, chunk, n_chunks):
    """x_ref: (4, TL) block.  wpair_ref: (36, 16, chunk) = [w1a,w1b,b1,g1,be1,w2]
    per pair, pre-broadcast along lanes.  wfuse_ref: (13, 4, chunk) = 10 fusion
    weight columns, fused bias (with b2 folded in), gf, bef."""
    inv_h = jnp.float32(1.0 / HIDDEN)
    inv_d = jnp.float32(1.0 / INPUT_DIM)

    def body(c, carry):
        off = pl.multiple_of(c * chunk, chunk)       # chunk is a multiple of 128
        lanes = pl.ds(off, chunk)

        # One row load + one 16-sublane broadcast per feature per chunk
        # (reused by the 3 pairs the feature participates in).
        rows = [x_ref[pl.ds(f, 1), lanes] for f in range(INPUT_DIM)]      # (1, chunk)
        xb16 = [jnp.broadcast_to(r, (HIDDEN, chunk)) for r in rows]       # (16, chunk)

        # Fusion accumulator (4, chunk): bias (with b2 folded) + direct terms.
        fused = wfuse_ref[COMB]                                           # (4, chunk)
        for f in range(INPUT_DIM):
            fused = fused + wfuse_ref[f] * rows[f]                        # (4,c)*(1,c)

        # Pairwise Linear(2,16) -> LayerNorm(16) -> ReLU -> Linear(16,1),
        # hidden dim on sublanes, rows lane-dense.  Weight tiles are loaded
        # from VMEM per chunk (vld slots), never broadcast in-kernel.
        for k, (i, j) in enumerate(PAIR_IDX):
            w1a = wpair_ref[0 * NPAIRS + k]
            w1b = wpair_ref[1 * NPAIRS + k]
            b1 = wpair_ref[2 * NPAIRS + k]
            g1 = wpair_ref[3 * NPAIRS + k]
            be1 = wpair_ref[4 * NPAIRS + k]
            w2 = wpair_ref[5 * NPAIRS + k]

            h = w1a * xb16[i] + w1b * xb16[j] + b1                        # (16, chunk)
            # One-pass LayerNorm stats: var = E[h^2] - mu^2.
            mu = jnp.sum(h, axis=0, keepdims=True) * inv_h                # (1, chunk)
            m2 = jnp.sum(h * h, axis=0, keepdims=True) * inv_h
            r = lax.rsqrt(m2 - mu * mu + EPS)
            hn = (h - mu) * (g1 * r) + be1
            hn = jnp.maximum(hn, 0.0)
            p = jnp.sum(hn * w2, axis=0, keepdims=True)                   # (1, chunk)
            # pair bias b2[k] already folded into the fusion bias row
            fused = fused + wfuse_ref[INPUT_DIM + k] * p

        # Fusion LayerNorm(4) + tanh (one-pass variance); lane-dense store.
        mu = jnp.sum(fused, axis=0, keepdims=True) * inv_d
        m2 = jnp.sum(fused * fused, axis=0, keepdims=True) * inv_d
        out = (fused - mu) * lax.rsqrt(m2 - mu * mu + EPS)
        out = out * wfuse_ref[COMB + 1] + wfuse_ref[COMB + 2]             # gf, bef
        o_ref[:, lanes] = jnp.tanh(out).astype(o_ref.dtype)
        return carry

    lax.fori_loop(0, n_chunks, body, 0)


def _round_up(v, m):
    return ((v + m - 1) // m) * m


def financial_feature_coupling(x, params, *, tl=8192, chunk=256):
    """x: (B, S, INPUT_DIM) float32 -> (B, S, INPUT_DIM) float32."""
    B, S, D = x.shape
    assert D == INPUT_DIM
    N = B * S

    # Grid lane tile: big (amortizes per-step overhead), multiple of 128.
    tl = max(128, _round_up(tl, 128))
    # v7x has 2 TensorCores: cap tl so mid/large inputs give >= 2 grid steps
    # and the "parallel" axis can actually shard over both cores.
    if N > 2 * 128:
        tl = min(tl, _round_up(pl.cdiv(N, 2), 128))
    tl = min(tl, _round_up(N, 128))

    # Inner register-blocking chunk: multiple of 128 that divides tl.  256
    # lanes keeps one chunk's live values inside the 64-vreg file (no spills).
    chunk = min(max(128, (chunk // 128) * 128), tl)
    while tl % chunk:
        chunk -= 128
    n_chunks = tl // chunk
    n_pad = _round_up(N, tl)

    # Feature-major view (D, N); tail pad fuses with this transpose.
    xt = jnp.transpose(x.reshape(N, D).astype(jnp.float32))               # (D, N)
    if n_pad != N:
        xt = jnp.pad(xt, ((0, 0), (0, n_pad - N)))

    # --- pre-broadcast weights to chunk lane width (done once, tiny) ---
    wstack = jnp.stack([params["w1a"], params["w1b"], params["b1"],
                        params["g1"], params["be1"], params["w2"]], axis=0)   # (6, H, NP)
    wcols = jnp.transpose(wstack, (0, 2, 1)).reshape(6 * NPAIRS, HIDDEN)      # row s*NP+k
    wpair = jnp.broadcast_to(wcols[:, :, None].astype(jnp.float32),
                             (6 * NPAIRS, HIDDEN, chunk))

    wfT = params["wfT"].astype(jnp.float32)                                   # (4, 10)
    bf = params["bf"][:, 0].astype(jnp.float32)                               # (4,)
    b2 = params["b2"][0].astype(jnp.float32)                                  # (6,)
    bf_eff = bf + wfT[:, INPUT_DIM:] @ b2          # fold pair output bias into fusion bias
    frows = jnp.concatenate([wfT.T,                                          # (10, 4)
                             bf_eff[None, :],
                             params["gf"].T.astype(jnp.float32),
                             params["bef"].T.astype(jnp.float32)], axis=0)   # (13, 4)
    wfuse = jnp.broadcast_to(frows[:, :, None], (COMB + 3, INPUT_DIM, chunk))

    flops_per_row = (NPAIRS * (4 * HIDDEN + 8 * HIDDEN + HIDDEN + 2 * HIDDEN + 1)
                     + 2 * COMB * INPUT_DIM + 8 * INPUT_DIM)
    cost = pl.CostEstimate(
        flops=n_pad * flops_per_row,
        transcendentals=n_pad * (NPAIRS + 1 + INPUT_DIM),
        bytes_accessed=2 * n_pad * INPUT_DIM * 4 + wpair.size * 4 + wfuse.size * 4,
    )

    kernel = functools.partial(_coupling_kernel, chunk=chunk, n_chunks=n_chunks)

    out_t = pl.pallas_call(
        kernel,
        out_shape=jax.ShapeDtypeStruct((D, n_pad), jnp.float32),
        grid_spec=pltpu.PrefetchScalarGridSpec(
            num_scalar_prefetch=0,
            grid=(n_pad // tl,),
            in_specs=[
                pl.BlockSpec((D, tl), lambda i: (0, i)),
                pl.BlockSpec(wpair.shape, lambda i: (0, 0, 0)),
                pl.BlockSpec(wfuse.shape, lambda i: (0, 0, 0)),
            ],
            out_specs=pl.BlockSpec((D, tl), lambda i: (0, i)),
        ),
        compiler_params=pltpu.CompilerParams(
            dimension_semantics=("parallel",),        # shards tiles over both v7x TCs
            vmem_limit_bytes=32 * 1024 * 1024,
        ),
        cost_estimate=cost,
    )(xt, wpair, wfuse)

    # Slice + transpose back (single pass).
    return jnp.transpose(out_t[:, :N]).reshape(B, S, D)


def init_params(key):
    """Deterministic, PyTorch-default-style init (uniform +/- 1/sqrt(fan_in))."""
    ks = jax.random.split(key, 7)
    b_in2 = 1.0 / jnp.sqrt(2.0)
    b_in16 = 1.0 / jnp.sqrt(16.0)
    b_in10 = 1.0 / jnp.sqrt(float(COMB))

    def u(k, shape, b):
        return jax.random.uniform(k, shape, jnp.float32, -b, b)

    params = {
        # pairwise Linear(2,16): column k = weights/bias of pair k
        "w1a": u(ks[0], (HIDDEN, NPAIRS), b_in2),
        "w1b": u(ks[1], (HIDDEN, NPAIRS), b_in2),
        "b1": u(ks[2], (HIDDEN, NPAIRS), b_in2),
        # pairwise LayerNorm(16)
        "g1": jnp.ones((HIDDEN, NPAIRS), jnp.float32),
        "be1": jnp.zeros((HIDDEN, NPAIRS), jnp.float32),
        # pairwise Linear(16,1)
        "w2": u(ks[3], (HIDDEN, NPAIRS), b_in16),
        "b2": u(ks[4], (1, NPAIRS), b_in16),
        # fusion Linear(10,4): PyTorch (out, in) layout
        "wfT": u(ks[5], (INPUT_DIM, COMB), b_in10),
        "bf": u(ks[6], (INPUT_DIM, 1), b_in10),
        # fusion LayerNorm(4)
        "gf": jnp.ones((INPUT_DIM, 1), jnp.float32),
        "bef": jnp.zeros((INPUT_DIM, 1), jnp.float32),
    }
    return params


def reference(x, params):
    """Pure-JAX reference (mirrors the PyTorch forward)."""
    B, S, D = x.shape
    xf = x.reshape(-1, D).astype(jnp.float32)
    cols = []
    for k, (i, j) in enumerate(PAIR_IDX):
        h = (xf[:, i:i + 1] * params["w1a"][:, k][None, :]
             + xf[:, j:j + 1] * params["w1b"][:, k][None, :]
             + params["b1"][:, k][None, :])
        mu = h.mean(-1, keepdims=True)
        var = ((h - mu) ** 2).mean(-1, keepdims=True)
        h = (h - mu) / jnp.sqrt(var + EPS)
        h = h * params["g1"][:, k][None, :] + params["be1"][:, k][None, :]
        h = jnp.maximum(h, 0.0)
        cols.append(h @ params["w2"][:, k][:, None] + params["b2"][0, k])
    pair_t = jnp.concatenate(cols, axis=-1)                    # (N, NPAIRS)
    comb = jnp.concatenate([xf, pair_t], axis=-1)              # (N, COMB)
    f = comb @ params["wfT"].T + params["bf"][:, 0]
    mu = f.mean(-1, keepdims=True)
    var = ((f - mu) ** 2).mean(-1, keepdims=True)
    f = (f - mu) / jnp.sqrt(var + EPS)
    f = f * params["gf"][:, 0] + params["bef"][:, 0]
    return jnp.tanh(f).reshape(B, S, D)


if __name__ == "__main__":
    key = jax.random.PRNGKey(0)
    pkey, xkey, xkey2 = jax.random.split(key, 3)
    params = init_params(pkey)

    # Small shape (single grid step, single inner chunk).
    B, S = 2, 8
    x = jax.random.normal(xkey, (B, S, INPUT_DIM), dtype=jnp.float32)
    out = jax.block_until_ready(financial_feature_coupling(x, params))
    ref = reference(x, params)
    assert out.shape == (B, S, INPUT_DIM)
    err = float(jnp.max(jnp.abs(out - ref)))
    assert jnp.allclose(out, ref, atol=2e-5, rtol=2e-5), f"max abs err = {err}"

    # Larger shape: exercises >=2 grid steps, multiple inner chunks, tail pad.
    x2 = jax.random.normal(xkey2, (4, 600, INPUT_DIM), dtype=jnp.float32)
    out2 = jax.block_until_ready(financial_feature_coupling(x2, params))
    ref2 = reference(x2, params)
    err2 = float(jnp.max(jnp.abs(out2 - ref2)))
    assert jnp.allclose(out2, ref2, atol=2e-5, rtol=2e-5), f"max abs err = {err2}"

    print("KERNEL_OK")
</pallas_src>

<mosaic_0001>
module attributes {stable_mosaic.version = 11 : i64} {
  func.func @_coupling_kernel(%arg0: i32, %arg1: memref<4x128xf32, #tpu.memory_space<vmem>>, %arg2: memref<36x16x128xf32, #tpu.memory_space<vmem>>, %arg3: memref<13x4x128xf32, #tpu.memory_space<vmem>>, %arg4: memref<4x128xf32, #tpu.memory_space<vmem>>) attributes {dimension_semantics = [#tpu.dimension_semantics<parallel>], iteration_bounds = array<i64: 1>, scalar_prefetch = 0 : i64, scratch_operands = 0 : i64, tpu.core_type = #tpu.core_type<tc>, window_params = [{transform_indices = @transform_0, window_bounds = array<i64: 4, 128>}, {pipeline_mode = #tpu.pipeline_mode<synchronous>, transform_indices = @transform_1, window_bounds = array<i64: 36, 16, 128>}, {pipeline_mode = #tpu.pipeline_mode<synchronous>, transform_indices = @transform_2, window_bounds = array<i64: 13, 4, 128>}, {transform_indices = @transform_3, window_bounds = array<i64: 4, 128>}]} {
    %cst = arith.constant 6.250000e-02 : f32
    %cst_0 = arith.constant 2.500000e-01 : f32
    %c0_i32 = arith.constant 0 : i32
    %c128_i32 = arith.constant 128 : i32
    %0 = arith.muli %c0_i32, %c128_i32 : i32
    %1 = tpu.assume_multiple %0, 128 : i32
    %c0 = arith.constant 0 : index
    %2 = arith.index_cast %1 : i32 to index
    %3 = vector.load %arg1[%c0, %2] : memref<4x128xf32, #tpu.memory_space<vmem>>, vector<1x128xf32>
    %c1 = arith.constant 1 : index
    %4 = arith.index_cast %1 : i32 to index
    %5 = vector.load %arg1[%c1, %4] : memref<4x128xf32, #tpu.memory_space<vmem>>, vector<1x128xf32>
    %c2 = arith.constant 2 : index
    %6 = arith.index_cast %1 : i32 to index
    %7 = vector.load %arg1[%c2, %6] : memref<4x128xf32, #tpu.memory_space<vmem>>, vector<1x128xf32>
    %c3 = arith.constant 3 : index
    %8 = arith.index_cast %1 : i32 to index
    %9 = vector.load %arg1[%c3, %8] : memref<4x128xf32, #tpu.memory_space<vmem>>, vector<1x128xf32>
    %10 = vector.shape_cast %3 : vector<1x128xf32> to vector<1x128xf32>
    %11 = vector.broadcast %10 : vector<1x128xf32> to vector<16x128xf32>
    %12 = vector.shape_cast %5 : vector<1x128xf32> to vector<1x128xf32>
    %13 = vector.broadcast %12 : vector<1x128xf32> to vector<16x128xf32>
    %14 = vector.shape_cast %7 : vector<1x128xf32> to vector<1x128xf32>
    %15 = vector.broadcast %14 : vector<1x128xf32> to vector<16x128xf32>
    %16 = vector.shape_cast %9 : vector<1x128xf32> to vector<1x128xf32>
    %17 = vector.broadcast %16 : vector<1x128xf32> to vector<16x128xf32>
    %c10 = arith.constant 10 : index
    %c0_1 = arith.constant 0 : index
    %c0_2 = arith.constant 0 : index
    %18 = vector.load %arg3[%c10, %c0_1, %c0_2] : memref<13x4x128xf32, #tpu.memory_space<vmem>>, vector<1x4x128xf32>
    %19 = vector.shape_cast %18 : vector<1x4x128xf32> to vector<4x128xf32>
    %c0_3 = arith.constant 0 : index
    %c0_4 = arith.constant 0 : index
    %c0_5 = arith.constant 0 : index
    %20 = vector.load %arg3[%c0_3, %c0_4, %c0_5] : memref<13x4x128xf32, #tpu.memory_space<vmem>>, vector<1x4x128xf32>
    %21 = vector.shape_cast %20 : vector<1x4x128xf32> to vector<4x128xf32>
    %22 = vector.broadcast %3 : vector<1x128xf32> to vector<4x128xf32>
    %23 = arith.mulf %21, %22 : vector<4x128xf32>
    %24 = arith.addf %19, %23 : vector<4x128xf32>
    %c1_6 = arith.constant 1 : index
    %c0_7 = arith.constant 0 : index
    %c0_8 = arith.constant 0 : index
    %25 = vector.load %arg3[%c1_6, %c0_7, %c0_8] : memref<13x4x128xf32, #tpu.memory_space<vmem>>, vector<1x4x128xf32>
    %26 = vector.shape_cast %25 : vector<1x4x128xf32> to vector<4x128xf32>
    %27 = vector.broadcast %5 : vector<1x128xf32> to vector<4x128xf32>
    %28 = arith.mulf %26, %27 : vector<4x128xf32>
    %29 = arith.addf %24, %28 : vector<4x128xf32>
    %c2_9 = arith.constant 2 : index
    %c0_10 = arith.constant 0 : index
    %c0_11 = arith.constant 0 : index
    %30 = vector.load %arg3[%c2_9, %c0_10, %c0_11] : memref<13x4x128xf32, #tpu.memory_space<vmem>>, vector<1x4x128xf32>
    %31 = vector.shape_cast %30 : vector<1x4x128xf32> to vector<4x128xf32>
    %32 = vector.broadcast %7 : vector<1x128xf32> to vector<4x128xf32>
    %33 = arith.mulf %31, %32 : vector<4x128xf32>
    %34 = arith.addf %29, %33 : vector<4x128xf32>
    %c3_12 = arith.constant 3 : index
    %c0_13 = arith.constant 0 : index
    %c0_14 = arith.constant 0 : index
    %35 = vector.load %arg3[%c3_12, %c0_13, %c0_14] : memref<13x4x128xf32, #tpu.memory_space<vmem>>, vector<1x4x128xf32>
    %36 = vector.shape_cast %35 : vector<1x4x128xf32> to vector<4x128xf32>
    %37 = vector.broadcast %9 : vector<1x128xf32> to vector<4x128xf32>
    %38 = arith.mulf %36, %37 : vector<4x128xf32>
    %39 = arith.addf %34, %38 : vector<4x128xf32>
    %c0_15 = arith.constant 0 : index
    %c0_16 = arith.constant 0 : index
    %c0_17 = arith.constant 0 : index
    %40 = vector.load %arg2[%c0_15, %c0_16, %c0_17] : memref<36x16x128xf32, #tpu.memory_space<vmem>>, vector<1x16x128xf32>
    %41 = vector.shape_cast %40 : vector<1x16x128xf32> to vector<16x128xf32>
    %c6 = arith.constant 6 : index
    %c0_18 = arith.constant 0 : index
    %c0_19 = arith.constant 0 : index
    %42 = vector.load %arg2[%c6, %c0_18, %c0_19] : memref<36x16x128xf32, #tpu.memory_space<vmem>>, vector<1x16x128xf32>
    %43 = vector.shape_cast %42 : vector<1x16x128xf32> to vector<16x128xf32>
    %c12 = arith.constant 12 : index
    %c0_20 = arith.constant 0 : index
    %c0_21 = arith.constant 0 : index
    %44 = vector.load %arg2[%c12, %c0_20, %c0_21] : memref<36x16x128xf32, #tpu.memory_space<vmem>>, vector<1x16x128xf32>
    %45 = vector.shape_cast %44 : vector<1x16x128xf32> to vector<16x128xf32>
    %c18 = arith.constant 18 : index
    %c0_22 = arith.constant 0 : index
    %c0_23 = arith.constant 0 : index
    %46 = vector.load %arg2[%c18, %c0_22, %c0_23] : memref<36x16x128xf32, #tpu.memory_space<vmem>>, vector<1x16x128xf32>
    %47 = vector.shape_cast %46 : vector<1x16x128xf32> to vector<16x128xf32>
    %c24 = arith.constant 24 : index
    %c0_24 = arith.constant 0 : index
    %c0_25 = arith.constant 0 : index
    %48 = vector.load %arg2[%c24, %c0_24, %c0_25] : memref<36x16x128xf32, #tpu.memory_space<vmem>>, vector<1x16x128xf32>
    %49 = vector.shape_cast %48 : vector<1x16x128xf32> to vector<16x128xf32>
    %c30 = arith.constant 30 : index
    %c0_26 = arith.constant 0 : index
    %c0_27 = arith.constant 0 : index
    %50 = vector.load %arg2[%c30, %c0_26, %c0_27] : memref<36x16x128xf32, #tpu.memory_space<vmem>>, vector<1x16x128xf32>
    %51 = vector.shape_cast %50 : vector<1x16x128xf32> to vector<16x128xf32>
    %52 = arith.mulf %41, %11 : vector<16x128xf32>
    %53 = arith.mulf %43, %13 : vector<16x128xf32>
    %54 = arith.addf %52, %53 : vector<16x128xf32>
    %55 = arith.addf %54, %45 : vector<16x128xf32>
    %cst_28 = arith.constant dense<0.000000e+00> : vector<128xf32>
    %56 = vector.multi_reduction <add>, %55, %cst_28 [0] : vector<16x128xf32> to vector<128xf32>
    %57 = vector.shape_cast %56 : vector<128xf32> to vector<1x128xf32>
    %58 = vector.broadcast %cst : f32 to vector<1x128xf32>
    %59 = arith.mulf %57, %58 : vector<1x128xf32>
    %60 = arith.mulf %55, %55 : vector<16x128xf32>
    %cst_29 = arith.constant dense<0.000000e+00> : vector<128xf32>
    %61 = vector.multi_reduction <add>, %60, %cst_29 [0] : vector<16x128xf32> to vector<128xf32>
    %62 = vector.shape_cast %61 : vector<128xf32> to vector<1x128xf32>
    %63 = vector.broadcast %cst : f32 to vector<1x128xf32>
    %64 = arith.mulf %62, %63 : vector<1x128xf32>
    %65 = arith.mulf %59, %59 : vector<1x128xf32>
    %66 = arith.subf %64, %65 : vector<1x128xf32>
    %cst_30 = arith.constant 9.99999974E-6 : f32
    %67 = vector.broadcast %cst_30 : f32 to vector<1x128xf32>
    %68 = arith.addf %66, %67 : vector<1x128xf32>
    %69 = math.rsqrt %68 : vector<1x128xf32>
    %70 = vector.broadcast %59 : vector<1x128xf32> to vector<16x128xf32>
    %71 = arith.subf %55, %70 : vector<16x128xf32>
    %72 = vector.broadcast %69 : vector<1x128xf32> to vector<16x128xf32>
    %73 = arith.mulf %47, %72 : vector<16x128xf32>
    %74 = arith.mulf %71, %73 : vector<16x128xf32>
    %75 = arith.addf %74, %49 : vector<16x128xf32>
    %cst_31 = arith.constant 0.000000e+00 : f32
    %76 = vector.broadcast %cst_31 : f32 to vector<16x128xf32>
    %77 = arith.maximumf %75, %76 : vector<16x128xf32>
    %78 = arith.mulf %77, %51 : vector<16x128xf32>
    %cst_32 = arith.constant dense<0.000000e+00> : vector<128xf32>
    %79 = vector.multi_reduction <add>, %78, %cst_32 [0] : vector<16x128xf32> to vector<128xf32>
    %80 = vector.shape_cast %79 : vector<128xf32> to vector<1x128xf32>
    %c4 = arith.constant 4 : index
    %c0_33 = arith.constant 0 : index
    %c0_34 = arith.constant 0 : index
    %81 = vector.load %arg3[%c4, %c0_33, %c0_34] : memref<13x4x128xf32, #tpu.memory_space<vmem>>, vector<1x4x128xf32>
    %82 = vector.shape_cast %81 : vector<1x4x128xf32> to vector<4x128xf32>
    %83 = vector.broadcast %80 : vector<1x128xf32> to vector<4x128xf32>
    %84 = arith.mulf %82, %83 : vector<4x128xf32>
    %85 = arith.addf %39, %84 : vector<4x128xf32>
    %c1_35 = arith.constant 1 : index
    %c0_36 = arith.constant 0 : index
    %c0_37 = arith.constant 0 : index
    %86 = vector.load %arg2[%c1_35, %c0_36, %c0_37] : memref<36x16x128xf32, #tpu.memory_space<vmem>>, vector<1x16x128xf32>
    %87 = vector.shape_cast %86 : vector<1x16x128xf32> to vector<16x128xf32>
    %c7 = arith.constant 7 : index
    %c0_38 = arith.constant 0 : index
    %c0_39 = arith.constant 0 : index
    %88 = vector.load %arg2[%c7, %c0_38, %c0_39] : memref<36x16x128xf32, #tpu.memory_space<vmem>>, vector<1x16x128xf32>
    %89 = vector.shape_cast %88 : vector<1x16x128xf32> to vector<16x128xf32>
    %c13 = arith.constant 13 : index
    %c0_40 = arith.constant 0 : index
    %c0_41 = arith.constant 0 : index
    %90 = vector.load %arg2[%c13, %c0_40, %c0_41] : memref<36x16x128xf32, #tpu.memory_space<vmem>>, vector<1x16x128xf32>
    %91 = vector.shape_cast %90 : vector<1x16x128xf32> to vector<16x128xf32>
    %c19 = arith.constant 19 : index
    %c0_42 = arith.constant 0 : index
    %c0_43 = arith.constant 0 : index
    %92 = vector.load %arg2[%c19, %c0_42, %c0_43] : memref<36x16x128xf32, #tpu.memory_space<vmem>>, vector<1x16x128xf32>
    %93 = vector.shape_cast %92 : vector<1x16x128xf32> to vector<16x128xf32>
    %c25 = arith.constant 25 : index
    %c0_44 = arith.constant 0 : index
    %c0_45 = arith.constant 0 : index
    %94 = vector.load %arg2[%c25, %c0_44, %c0_45] : memref<36x16x128xf32, #tpu.memory_space<vmem>>, vector<1x16x128xf32>
    %95 = vector.shape_cast %94 : vector<1x16x128xf32> to vector<16x128xf32>
    %c31 = arith.constant 31 : index
    %c0_46 = arith.constant 0 : index
    %c0_47 = arith.constant 0 : index
    %96 = vector.load %arg2[%c31, %c0_46, %c0_47] : memref<36x16x128xf32, #tpu.memory_space<vmem>>, vector<1x16x128xf32>
    %97 = vector.shape_cast %96 : vector<1x16x128xf32> to vector<16x128xf32>
    %98 = arith.mulf %87, %11 : vector<16x128xf32>
    %99 = arith.mulf %89, %15 : vector<16x128xf32>
    %100 = arith.addf %98, %99 : vector<16x128xf32>
    %101 = arith.addf %100, %91 : vector<16x128xf32>
    %cst_48 = arith.constant dense<0.000000e+00> : vector<128xf32>
    %102 = vector.multi_reduction <add>, %101, %cst_48 [0] : vector<16x128xf32> to vector<128xf32>
    %103 = vector.shape_cast %102 : vector<128xf32> to vector<1x128xf32>
    %104 = vector.broadcast %cst : f32 to vector<1x128xf32>
    %105 = arith.mulf %103, %104 : vector<1x128xf32>
    %106 = arith.mulf %101, %101 : vector<16x128xf32>
    %cst_49 = arith.constant dense<0.000000e+00> : vector<128xf32>
    %107 = vector.multi_reduction <add>, %106, %cst_49 [0] : vector<16x128xf32> to vector<128xf32>
    %108 = vector.shape_cast %107 : vector<128xf32> to vector<1x128xf32>
    %109 = vector.broadcast %cst : f32 to vector<1x128xf32>
    %110 = arith.mulf %108, %109 : vector<1x128xf32>
    %111 = arith.mulf %105, %105 : vector<1x128xf32>
    %112 = arith.subf %110, %111 : vector<1x128xf32>
    %cst_50 = arith.constant 9.99999974E-6 : f32
    %113 = vector.broadcast %cst_50 : f32 to vector<1x128xf32>
    %114 = arith.addf %112, %113 : vector<1x128xf32>
    %115 = math.rsqrt %114 : vector<1x128xf32>
    %116 = vector.broadcast %105 : vector<1x128xf32> to vector<16x128xf32>
    %117 = arith.subf %101, %116 : vector<16x128xf32>
    %118 = vector.broadcast %115 : vector<1x128xf32> to vector<16x128xf32>
    %119 = arith.mulf %93, %118 : vector<16x128xf32>
    %120 = arith.mulf %117, %119 : vector<16x128xf32>
    %121 = arith.addf %120, %95 : vector<16x128xf32>
    %cst_51 = arith.constant 0.000000e+00 : f32
    %122 = vector.broadcast %cst_51 : f32 to vector<16x128xf32>
    %123 = arith.maximumf %121, %122 : vector<16x128xf32>
    %124 = arith.mulf %123, %97 : vector<16x128xf32>
    %cst_52 = arith.constant dense<0.000000e+00> : vector<128xf32>
    %125 = vector.multi_reduction <add>, %124, %cst_52 [0] : vector<16x128xf32> to vector<128xf32>
    %126 = vector.shape_cast %125 : vector<128xf32> to vector<1x128xf32>
    %c5 = arith.constant 5 : index
    %c0_53 = arith.constant 0 : index
    %c0_54 = arith.constant 0 : index
    %127 = vector.load %arg3[%c5, %c0_53, %c0_54] : memref<13x4x128xf32, #tpu.memory_space<vmem>>, vector<1x4x128xf32>
    %128 = vector.shape_cast %127 : vector<1x4x128xf32> to vector<4x128xf32>
    %129 = vector.broadcast %126 : vector<1x128xf32> to vector<4x128xf32>
    %130 = arith.mulf %128, %129 : vector<4x128xf32>
    %131 = arith.addf %85, %130 : vector<4x128xf32>
    %c2_55 = arith.constant 2 : index
    %c0_56 = arith.constant 0 : index
    %c0_57 = arith.constant 0 : index
    %132 = vector.load %arg2[%c2_55, %c0_56, %c0_57] : memref<36x16x128xf32, #tpu.memory_space<vmem>>, vector<1x16x128xf32>
    %133 = vector.shape_cast %132 : vector<1x16x128xf32> to vector<16x128xf32>
    %c8 = arith.constant 8 : index
    %c0_58 = arith.constant 0 : index
    %c0_59 = arith.constant 0 : index
    %134 = vector.load %arg2[%c8, %c0_58, %c0_59] : memref<36x16x128xf32, #tpu.memory_space<vmem>>, vector<1x16x128xf32>
    %135 = vector.shape_cast %134 : vector<1x16x128xf32> to vector<16x128xf32>
    %c14 = arith.constant 14 : index
    %c0_60 = arith.constant 0 : index
    %c0_61 = arith.constant 0 : index
    %136 = vector.load %arg2[%c14, %c0_60, %c0_61] : memref<36x16x128xf32, #tpu.memory_space<vmem>>, vector<1x16x128xf32>
    %137 = vector.shape_cast %136 : vector<1x16x128xf32> to vector<16x128xf32>
    %c20 = arith.constant 20 : index
    %c0_62 = arith.constant 0 : index
    %c0_63 = arith.constant 0 : index
    %138 = vector.load %arg2[%c20, %c0_62, %c0_63] : memref<36x16x128xf32, #tpu.memory_space<vmem>>, vector<1x16x128xf32>
    %139 = vector.shape_cast %138 : vector<1x16x128xf32> to vector<16x128xf32>
    %c26 = arith.constant 26 : index
    %c0_64 = arith.constant 0 : index
    %c0_65 = arith.constant 0 : index
    %140 = vector.load %arg2[%c26, %c0_64, %c0_65] : memref<36x16x128xf32, #tpu.memory_space<vmem>>, vector<1x16x128xf32>
    %141 = vector.shape_cast %140 : vector<1x16x128xf32> to vector<16x128xf32>
    %c32 = arith.constant 32 : index
    %c0_66 = arith.constant 0 : index
    %c0_67 = arith.constant 0 : index
    %142 = vector.load %arg2[%c32, %c0_66, %c0_67] : memref<36x16x128xf32, #tpu.memory_space<vmem>>, vector<1x16x128xf32>
    %143 = vector.shape_cast %142 : vector<1x16x128xf32> to vector<16x128xf32>
    %144 = arith.mulf %133, %11 : vector<16x128xf32>
    %145 = arith.mulf %135, %17 : vector<16x128xf32>
    %146 = arith.addf %144, %145 : vector<16x128xf32>
    %147 = arith.addf %146, %137 : vector<16x128xf32>
    %cst_68 = arith.constant dense<0.000000e+00> : vector<128xf32>
    %148 = vector.multi_reduction <add>, %147, %cst_68 [0] : vector<16x128xf32> to vector<128xf32>
    %149 = vector.shape_cast %148 : vector<128xf32> to vector<1x128xf32>
    %150 = vector.broadcast %cst : f32 to vector<1x128xf32>
    %151 = arith.mulf %149, %150 : vector<1x128xf32>
    %152 = arith.mulf %147, %147 : vector<16x128xf32>
    %cst_69 = arith.constant dense<0.000000e+00> : vector<128xf32>
    %153 = vector.multi_reduction <add>, %152, %cst_69 [0] : vector<16x128xf32> to vector<128xf32>
    %154 = vector.shape_cast %153 : vector<128xf32> to vector<1x128xf32>
    %155 = vector.broadcast %cst : f32 to vector<1x128xf32>
    %156 = arith.mulf %154, %155 : vector<1x128xf32>
    %157 = arith.mulf %151, %151 : vector<1x128xf32>
    %158 = arith.subf %156, %157 : vector<1x128xf32>
    %cst_70 = arith.constant 9.99999974E-6 : f32
    %159 = vector.broadcast %cst_70 : f32 to vector<1x128xf32>
    %160 = arith.addf %158, %159 : vector<1x128xf32>
    %161 = math.rsqrt %160 : vector<1x128xf32>
    %162 = vector.broadcast %151 : vector<1x128xf32> to vector<16x128xf32>
    %163 = arith.subf %147, %162 : vector<16x128xf32>
    %164 = vector.broadcast %161 : vector<1x128xf32> to vector<16x128xf32>
    %165 = arith.mulf %139, %164 : vector<16x128xf32>
    %166 = arith.mulf %163, %165 : vector<16x128xf32>
    %167 = arith.addf %166, %141 : vector<16x128xf32>
    %cst_71 = arith.constant 0.000000e+00 : f32
    %168 = vector.broadcast %cst_71 : f32 to vector<16x128xf32>
    %169 = arith.maximumf %167, %168 : vector<16x128xf32>
    %170 = arith.mulf %169, %143 : vector<16x128xf32>
    %cst_72 = arith.constant dense<0.000000e+00> : vector<128xf32>
    %171 = vector.multi_reduction <add>, %170, %cst_72 [0] : vector<16x128xf32> to vector<128xf32>
    %172 = vector.shape_cast %171 : vector<128xf32> to vector<1x128xf32>
    %c6_73 = arith.constant 6 : index
    %c0_74 = arith.constant 0 : index
    %c0_75 = arith.constant 0 : index
    %173 = vector.load %arg3[%c6_73, %c0_74, %c0_75] : memref<13x4x128xf32, #tpu.memory_space<vmem>>, vector<1x4x128xf32>
    %174 = vector.shape_cast %173 : vector<1x4x128xf32> to vector<4x128xf32>
    %175 = vector.broadcast %172 : vector<1x128xf32> to vector<4x128xf32>
    %176 = arith.mulf %174, %175 : vector<4x128xf32>
    %177 = arith.addf %131, %176 : vector<4x128xf32>
    %c3_76 = arith.constant 3 : index
    %c0_77 = arith.constant 0 : index
    %c0_78 = arith.constant 0 : index
    %178 = vector.load %arg2[%c3_76, %c0_77, %c0_78] : memref<36x16x128xf32, #tpu.memory_space<vmem>>, vector<1x16x128xf32>
    %179 = vector.shape_cast %178 : vector<1x16x128xf32> to vector<16x128xf32>
    %c9 = arith.constant 9 : index
    %c0_79 = arith.constant 0 : index
    %c0_80 = arith.constant 0 : index
    %180 = vector.load %arg2[%c9, %c0_79, %c0_80] : memref<36x16x128xf32, #tpu.memory_space<vmem>>, vector<1x16x128xf32>
    %181 = vector.shape_cast %180 : vector<1x16x128xf32> to vector<16x128xf32>
    %c15 = arith.constant 15 : index
    %c0_81 = arith.constant 0 : index
    %c0_82 = arith.constant 0 : index
    %182 = vector.load %arg2[%c15, %c0_81, %c0_82] : memref<36x16x128xf32, #tpu.memory_space<vmem>>, vector<1x16x128xf32>
    %183 = vector.shape_cast %182 : vector<1x16x128xf32> to vector<16x128xf32>
    %c21 = arith.constant 21 : index
    %c0_83 = arith.constant 0 : index
    %c0_84 = arith.constant 0 : index
    %184 = vector.load %arg2[%c21, %c0_83, %c0_84] : memref<36x16x128xf32, #tpu.memory_space<vmem>>, vector<1x16x128xf32>
    %185 = vector.shape_cast %184 : vector<1x16x128xf32> to vector<16x128xf32>
    %c27 = arith.constant 27 : index
    %c0_85 = arith.constant 0 : index
    %c0_86 = arith.constant 0 : index
    %186 = vector.load %arg2[%c27, %c0_85, %c0_86] : memref<36x16x128xf32, #tpu.memory_space<vmem>>, vector<1x16x128xf32>
    %187 = vector.shape_cast %186 : vector<1x16x128xf32> to vector<16x128xf32>
    %c33 = arith.constant 33 : index
    %c0_87 = arith.constant 0 : index
    %c0_88 = arith.constant 0 : index
    %188 = vector.load %arg2[%c33, %c0_87, %c0_88] : memref<36x16x128xf32, #tpu.memory_space<vmem>>, vector<1x16x128xf32>
    %189 = vector.shape_cast %188 : vector<1x16x128xf32> to vector<16x128xf32>
    %190 = arith.mulf %179, %13 : vector<16x128xf32>
    %191 = arith.mulf %181, %15 : vector<16x128xf32>
    %192 = arith.addf %190, %191 : vector<16x128xf32>
    %193 = arith.addf %192, %183 : vector<16x128xf32>
    %cst_89 = arith.constant dense<0.000000e+00> : vector<128xf32>
    %194 = vector.multi_reduction <add>, %193, %cst_89 [0] : vector<16x128xf32> to vector<128xf32>
    %195 = vector.shape_cast %194 : vector<128xf32> to vector<1x128xf32>
    %196 = vector.broadcast %cst : f32 to vector<1x128xf32>
    %197 = arith.mulf %195, %196 : vector<1x128xf32>
    %198 = arith.mulf %193, %193 : vector<16x128xf32>
    %cst_90 = arith.constant dense<0.000000e+00> : vector<128xf32>
    %199 = vector.multi_reduction <add>, %198, %cst_90 [0] : vector<16x128xf32> to vector<128xf32>
    %200 = vector.shape_cast %199 : vector<128xf32> to vector<1x128xf32>
    %201 = vector.broadcast %cst : f32 to vector<1x128xf32>
    %202 = arith.mulf %200, %201 : vector<1x128xf32>
    %203 = arith.mulf %197, %197 : vector<1x128xf32>
    %204 = arith.subf %202, %203 : vector<1x128xf32>
    %cst_91 = arith.constant 9.99999974E-6 : f32
    %205 = vector.broadcast %cst_91 : f32 to vector<1x128xf32>
    %206 = arith.addf %204, %205 : vector<1x128xf32>
    %207 = math.rsqrt %206 : vector<1x128xf32>
    %208 = vector.broadcast %197 : vector<1x128xf32> to vector<16x128xf32>
    %209 = arith.subf %193, %208 : vector<16x128xf32>
    %210 = vector.broadcast %207 : vector<1x128xf32> to vector<16x128xf32>
    %211 = arith.mulf %185, %210 : vector<16x128xf32>
    %212 = arith.mulf %209, %211 : vector<16x128xf32>
    %213 = arith.addf %212, %187 : vector<16x128xf32>
    %cst_92 = arith.constant 0.000000e+00 : f32
    %214 = vector.broadcast %cst_92 : f32 to vector<16x128xf32>
    %215 = arith.maximumf %213, %214 : vector<16x128xf32>
    %216 = arith.mulf %215, %189 : vector<16x128xf32>
    %cst_93 = arith.constant dense<0.000000e+00> : vector<128xf32>
    %217 = vector.multi_reduction <add>, %216, %cst_93 [0] : vector<16x128xf32> to vector<128xf32>
    %218 = vector.shape_cast %217 : vector<128xf32> to vector<1x128xf32>
    %c7_94 = arith.constant 7 : index
    %c0_95 = arith.constant 0 : index
    %c0_96 = arith.constant 0 : index
    %219 = vector.load %arg3[%c7_94, %c0_95, %c0_96] : memref<13x4x128xf32, #tpu.memory_space<vmem>>, vector<1x4x128xf32>
    %220 = vector.shape_cast %219 : vector<1x4x128xf32> to vector<4x128xf32>
    %221 = vector.broadcast %218 : vector<1x128xf32> to vector<4x128xf32>
    %222 = arith.mulf %220, %221 : vector<4x128xf32>
    %223 = arith.addf %177, %222 : vector<4x128xf32>
    %c4_97 = arith.constant 4 : index
    %c0_98 = arith.constant 0 : index
    %c0_99 = arith.constant 0 : index
    %224 = vector.load %arg2[%c4_97, %c0_98, %c0_99] : memref<36x16x128xf32, #tpu.memory_space<vmem>>, vector<1x16x128xf32>
    %225 = vector.shape_cast %224 : vector<1x16x128xf32> to vector<16x128xf32>
    %c10_100 = arith.constant 10 : index
    %c0_101 = arith.constant 0 : index
    %c0_102 = arith.constant 0 : index
    %226 = vector.load %arg2[%c10_100, %c0_101, %c0_102] : memref<36x16x128xf32, #tpu.memory_space<vmem>>, vector<1x16x128xf32>
    %227 = vector.shape_cast %226 : vector<1x16x128xf32> to vector<16x128xf32>
    %c16 = arith.constant 16 : index
    %c0_103 = arith.constant 0 : index
    %c0_104 = arith.constant 0 : index
    %228 = vector.load %arg2[%c16, %c0_103, %c0_104] : memref<36x16x128xf32, #tpu.memory_space<vmem>>, vector<1x16x128xf32>
    %229 = vector.shape_cast %228 : vector<1x16x128xf32> to vector<16x128xf32>
    %c22 = arith.constant 22 : index
    %c0_105 = arith.constant 0 : index
    %c0_106 = arith.constant 0 : index
    %230 = vector.load %arg2[%c22, %c0_105, %c0_106] : memref<36x16x128xf32, #tpu.memory_space<vmem>>, vector<1x16x128xf32>
    %231 = vector.shape_cast %230 : vector<1x16x128xf32> to vector<16x128xf32>
    %c28 = arith.constant 28 : index
    %c0_107 = arith.constant 0 : index
    %c0_108 = arith.constant 0 : index
    %232 = vector.load %arg2[%c28, %c0_107, %c0_108] : memref<36x16x128xf32, #tpu.memory_space<vmem>>, vector<1x16x128xf32>
    %233 = vector.shape_cast %232 : vector<1x16x128xf32> to vector<16x128xf32>
    %c34 = arith.constant 34 : index
    %c0_109 = arith.constant 0 : index
    %c0_110 = arith.constant 0 : index
    %234 = vector.load %arg2[%c34, %c0_109, %c0_110] : memref<36x16x128xf32, #tpu.memory_space<vmem>>, vector<1x16x128xf32>
    %235 = vector.shape_cast %234 : vector<1x16x128xf32> to vector<16x128xf32>
    %236 = arith.mulf %225, %13 : vector<16x128xf32>
    %237 = arith.mulf %227, %17 : vector<16x128xf32>
    %238 = arith.addf %236, %237 : vector<16x128xf32>
    %239 = arith.addf %238, %229 : vector<16x128xf32>
    %cst_111 = arith.constant dense<0.000000e+00> : vector<128xf32>
    %240 = vector.multi_reduction <add>, %239, %cst_111 [0] : vector<16x128xf32> to vector<128xf32>
    %241 = vector.shape_cast %240 : vector<128xf32> to vector<1x128xf32>
    %242 = vector.broadcast %cst : f32 to vector<1x128xf32>
    %243 = arith.mulf %241, %242 : vector<1x128xf32>
    %244 = arith.mulf %239, %239 : vector<16x128xf32>
    %cst_112 = arith.constant dense<0.000000e+00> : vector<128xf32>
    %245 = vector.multi_reduction <add>, %244, %cst_112 [0] : vector<16x128xf32> to vector<128xf32>
    %246 = vector.shape_cast %245 : vector<128xf32> to vector<1x128xf32>
    %247 = vector.broadcast %cst : f32 to vector<1x128xf32>
    %248 = arith.mulf %246, %247 : vector<1x128xf32>
    %249 = arith.mulf %243, %243 : vector<1x128xf32>
    %250 = arith.subf %248, %249 : vector<1x128xf32>
    %cst_113 = arith.constant 9.99999974E-6 : f32
    %251 = vector.broadcast %cst_113 : f32 to vector<1x128xf32>
    %252 = arith.addf %250, %251 : vector<1x128xf32>
    %253 = math.rsqrt %252 : vector<1x128xf32>
    %254 = vector.broadcast %243 : vector<1x128xf32> to vector<16x128xf32>
    %255 = arith.subf %239, %254 : vector<16x128xf32>
    %256 = vector.broadcast %253 : vector<1x128xf32> to vector<16x128xf32>
    %257 = arith.mulf %231, %256 : vector<16x128xf32>
    %258 = arith.mulf %255, %257 : vector<16x128xf32>
    %259 = arith.addf %258, %233 : vector<16x128xf32>
    %cst_114 = arith.constant 0.000000e+00 : f32
    %260 = vector.broadcast %cst_114 : f32 to vector<16x128xf32>
    %261 = arith.maximumf %259, %260 : vector<16x128xf32>
    %262 = arith.mulf %261, %235 : vector<16x128xf32>
    %cst_115 = arith.constant dense<0.000000e+00> : vector<128xf32>
    %263 = vector.multi_reduction <add>, %262, %cst_115 [0] : vector<16x128xf32> to vector<128xf32>
    %264 = vector.shape_cast %263 : vector<128xf32> to vector<1x128xf32>
    %c8_116 = arith.constant 8 : index
    %c0_117 = arith.constant 0 : index
    %c0_118 = arith.constant 0 : index
    %265 = vector.load %arg3[%c8_116, %c0_117, %c0_118] : memref<13x4x128xf32, #tpu.memory_space<vmem>>, vector<1x4x128xf32>
    %266 = vector.shape_cast %265 : vector<1x4x128xf32> to vector<4x128xf32>
    %267 = vector.broadcast %264 : vector<1x128xf32> to vector<4x128xf32>
    %268 = arith.mulf %266, %267 : vector<4x128xf32>
    %269 = arith.addf %223, %268 : vector<4x128xf32>
    %c5_119 = arith.constant 5 : index
    %c0_120 = arith.constant 0 : index
    %c0_121 = arith.constant 0 : index
    %270 = vector.load %arg2[%c5_119, %c0_120, %c0_121] : memref<36x16x128xf32, #tpu.memory_space<vmem>>, vector<1x16x128xf32>
    %271 = vector.shape_cast %270 : vector<1x16x128xf32> to vector<16x128xf32>
    %c11 = arith.constant 11 : index
    %c0_122 = arith.constant 0 : index
    %c0_123 = arith.constant 0 : index
    %272 = vector.load %arg2[%c11, %c0_122, %c0_123] : memref<36x16x128xf32, #tpu.memory_space<vmem>>, vector<1x16x128xf32>
    %273 = vector.shape_cast %272 : vector<1x16x128xf32> to vector<16x128xf32>
    %c17 = arith.constant 17 : index
    %c0_124 = arith.constant 0 : index
    %c0_125 = arith.constant 0 : index
    %274 = vector.load %arg2[%c17, %c0_124, %c0_125] : memref<36x16x128xf32, #tpu.memory_space<vmem>>, vector<1x16x128xf32>
    %275 = vector.shape_cast %274 : vector<1x16x128xf32> to vector<16x128xf32>
    %c23 = arith.constant 23 : index
    %c0_126 = arith.constant 0 : index
    %c0_127 = arith.constant 0 : index
    %276 = vector.load %arg2[%c23, %c0_126, %c0_127] : memref<36x16x128xf32, #tpu.memory_space<vmem>>, vector<1x16x128xf32>
    %277 = vector.shape_cast %276 : vector<1x16x128xf32> to vector<16x128xf32>
    %c29 = arith.constant 29 : index
    %c0_128 = arith.constant 0 : index
    %c0_129 = arith.constant 0 : index
    %278 = vector.load %arg2[%c29, %c0_128, %c0_129] : memref<36x16x128xf32, #tpu.memory_space<vmem>>, vector<1x16x128xf32>
    %279 = vector.shape_cast %278 : vector<1x16x128xf32> to vector<16x128xf32>
    %c35 = arith.constant 35 : index
    %c0_130 = arith.constant 0 : index
    %c0_131 = arith.constant 0 : index
    %280 = vector.load %arg2[%c35, %c0_130, %c0_131] : memref<36x16x128xf32, #tpu.memory_space<vmem>>, vector<1x16x128xf32>
    %281 = vector.shape_cast %280 : vector<1x16x128xf32> to vector<16x128xf32>
    %282 = arith.mulf %271, %15 : vector<16x128xf32>
    %283 = arith.mulf %273, %17 : vector<16x128xf32>
    %284 = arith.addf %282, %283 : vector<16x128xf32>
    %285 = arith.addf %284, %275 : vector<16x128xf32>
    %cst_132 = arith.constant dense<0.000000e+00> : vector<128xf32>
    %286 = vector.multi_reduction <add>, %285, %cst_132 [0] : vector<16x128xf32> to vector<128xf32>
    %287 = vector.shape_cast %286 : vector<128xf32> to vector<1x128xf32>
    %288 = vector.broadcast %cst : f32 to vector<1x128xf32>
    %289 = arith.mulf %287, %288 : vector<1x128xf32>
    %290 = arith.mulf %285, %285 : vector<16x128xf32>
    %cst_133 = arith.constant dense<0.000000e+00> : vector<128xf32>
    %291 = vector.multi_reduction <add>, %290, %cst_133 [0] : vector<16x128xf32> to vector<128xf32>
    %292 = vector.shape_cast %291 : vector<128xf32> to vector<1x128xf32>
    %293 = vector.broadcast %cst : f32 to vector<1x128xf32>
    %294 = arith.mulf %292, %293 : vector<1x128xf32>
    %295 = arith.mulf %289, %289 : vector<1x128xf32>
    %296 = arith.subf %294, %295 : vector<1x128xf32>
    %cst_134 = arith.constant 9.99999974E-6 : f32
    %297 = vector.broadcast %cst_134 : f32 to vector<1x128xf32>
    %298 = arith.addf %296, %297 : vector<1x128xf32>
    %299 = math.rsqrt %298 : vector<1x128xf32>
    %300 = vector.broadcast %289 : vector<1x128xf32> to vector<16x128xf32>
    %301 = arith.subf %285, %300 : vector<16x128xf32>
    %302 = vector.broadcast %299 : vector<1x128xf32> to vector<16x128xf32>
    %303 = arith.mulf %277, %302 : vector<16x128xf32>
    %304 = arith.mulf %301, %303 : vector<16x128xf32>
    %305 = arith.addf %304, %279 : vector<16x128xf32>
    %cst_135 = arith.constant 0.000000e+00 : f32
    %306 = vector.broadcast %cst_135 : f32 to vector<16x128xf32>
    %307 = arith.maximumf %305, %306 : vector<16x128xf32>
    %308 = arith.mulf %307, %281 : vector<16x128xf32>
    %cst_136 = arith.constant dense<0.000000e+00> : vector<128xf32>
    %309 = vector.multi_reduction <add>, %308, %cst_136 [0] : vector<16x128xf32> to vector<128xf32>
    %310 = vector.shape_cast %309 : vector<128xf32> to vector<1x128xf32>
    %c9_137 = arith.constant 9 : index
    %c0_138 = arith.constant 0 : index
    %c0_139 = arith.constant 0 : index
    %311 = vector.load %arg3[%c9_137, %c0_138, %c0_139] : memref<13x4x128xf32, #tpu.memory_space<vmem>>, vector<1x4x128xf32>
    %312 = vector.shape_cast %311 : vector<1x4x128xf32> to vector<4x128xf32>
    %313 = vector.broadcast %310 : vector<1x128xf32> to vector<4x128xf32>
    %314 = arith.mulf %312, %313 : vector<4x128xf32>
    %315 = arith.addf %269, %314 : vector<4x128xf32>
    %cst_140 = arith.constant dense<0.000000e+00> : vector<128xf32>
    %316 = vector.multi_reduction <add>, %315, %cst_140 [0] : vector<4x128xf32> to vector<128xf32>
    %317 = vector.shape_cast %316 : vector<128xf32> to vector<1x128xf32>
    %318 = vector.broadcast %cst_0 : f32 to vector<1x128xf32>
    %319 = arith.mulf %317, %318 : vector<1x128xf32>
    %320 = arith.mulf %315, %315 : vector<4x128xf32>
    %cst_141 = arith.constant dense<0.000000e+00> : vector<128xf32>
    %321 = vector.multi_reduction <add>, %320, %cst_141 [0] : vector<4x128xf32> to vector<128xf32>
    %322 = vector.shape_cast %321 : vector<128xf32> to vector<1x128xf32>
    %323 = vector.broadcast %cst_0 : f32 to vector<1x128xf32>
    %324 = arith.mulf %322, %323 : vector<1x128xf32>
    %325 = vector.broadcast %319 : vector<1x128xf32> to vector<4x128xf32>
    %326 = arith.subf %315, %325 : vector<4x128xf32>
    %327 = arith.mulf %319, %319 : vector<1x128xf32>
    %328 = arith.subf %324, %327 : vector<1x128xf32>
    %cst_142 = arith.constant 9.99999974E-6 : f32
    %329 = vector.broadcast %cst_142 : f32 to vector<1x128xf32>
    %330 = arith.addf %328, %329 : vector<1x128xf32>
    %331 = math.rsqrt %330 : vector<1x128xf32>
    %332 = vector.broadcast %331 : vector<1x128xf32> to vector<4x128xf32>
    %333 = arith.mulf %326, %332 : vector<4x128xf32>
    %c11_143 = arith.constant 11 : index
    %c0_144 = arith.constant 0 : index
    %c0_145 = arith.constant 0 : index
    %334 = vector.load %arg3[%c11_143, %c0_144, %c0_145] : memref<13x4x128xf32, #tpu.memory_space<vmem>>, vector<1x4x128xf32>
    %335 = vector.shape_cast %334 : vector<1x4x128xf32> to vector<4x128xf32>
    %336 = arith.mulf %333, %335 : vector<4x128xf32>
    %c12_146 = arith.constant 12 : index
    %c0_147 = arith.constant 0 : index
    %c0_148 = arith.constant 0 : index
    %337 = vector.load %arg3[%c12_146, %c0_147, %c0_148] : memref<13x4x128xf32, #tpu.memory_space<vmem>>, vector<1x4x128xf32>
    %338 = vector.shape_cast %337 : vector<1x4x128xf32> to vector<4x128xf32>
    %339 = arith.addf %336, %338 : vector<4x128xf32>
    %340 = math.tanh %339 : vector<4x128xf32>
    %c0_149 = arith.constant 0 : index
    %341 = arith.index_cast %1 : i32 to index
    %342 = vector.load %arg4[%c0_149, %341] : memref<4x128xf32, #tpu.memory_space<vmem>>, vector<4x128xf32>
    tpu.vector_store %arg4[%c0_149, %341], %340 {strides = array<i32>} : memref<4x128xf32, #tpu.memory_space<vmem>>, vector<4x128xf32>,
    %c1_i32 = arith.constant 1 : i32
    return
  }
  func.func @transform_0(%arg0: i32) -> (i32, i32) {
    %c0_i32 = arith.constant 0 : i32
    %c0_i32_0 = arith.constant 0 : i32
    return %c0_i32, %arg0 : i32, i32
  }
  func.func @transform_1(%arg0: i32) -> (i32, i32, i32) {
    %c0_i32 = arith.constant 0 : i32
    %c0_i32_0 = arith.constant 0 : i32
    %c0_i32_1 = arith.constant 0 : i32
    %c0_i32_2 = arith.constant 0 : i32
    return %c0_i32, %c0_i32_0, %c0_i32_1 : i32, i32, i32
  }
  func.func @transform_2(%arg0: i32) -> (i32, i32, i32) {
    %c0_i32 = arith.constant 0 : i32
    %c0_i32_0 = arith.constant 0 : i32
    %c0_i32_1 = arith.constant 0 : i32
    %c0_i32_2 = arith.constant 0 : i32
    return %c0_i32, %c0_i32_0, %c0_i32_1 : i32, i32, i32
  }
  func.func @transform_3(%arg0: i32) -> (i32, i32) {
    %c0_i32 = arith.constant 0 : i32
    %c0_i32_0 = arith.constant 0 : i32
    return %c0_i32, %arg0 : i32, i32
  }
}

</mosaic_0001>

<llo_original>
// kernel: tpu_custom_call.1
$region0: #{tpu_custom_call.1}
  #allocation0 [shape = 'u32[]', space=smem, size = 0x4, offset = 0x4, fixed_abs, tag = 'smem constant byte address 0x4 - core index']
  #allocation1 [shape = 'u32[144,128]{1,0:T(1,128)}', space=vmem, size = 0x12000, scoped, tag = 'internal scratch']
  %s0 = inlined_call_operand.hbm [shape: f32[4,128], index: 0, kind: input, shape index: {}]
  %s1 = inlined_call_operand.hbm [shape: f32[36,16,128], index: 1, kind: input, shape index: {}]
  %s2 = inlined_call_operand.hbm [shape: f32[13,4,128], index: 2, kind: input, shape index: {}]
  %s3 = inlined_call_operand.hbm [shape: f32[4,128], index: 3, kind: output, shape index: {}]
  %s4 = sld [smem:[#allocation0]]
  $region34: #{tpu_custom_call.1} parent=0
    _
  %s6 = ssub.s32 1, %s4
  %s7 = scalar_select 0, %s6, %s4
  $region1: #{tpu_custom_call.1} parent=0
    #allocation2 [shape = 'u8[2048]{0}', space=vmem, size = 0x800, scoped, tag = 'input window, operand 0, single buffered']
    #allocation3 [shape = 's32[1]{0}', space=sflag, size = 0x4, scoped, tag = 'scoped memory for tpu_custom_call.1']
    #allocation4 [shape = 's32[1]{0}', space=sflag, size = 0x4, scoped, tag = 'scoped memory for tpu_custom_call.1']
    #allocation5 [shape = 'u8[294912]{0}', space=vmem, size = 0x48000, scoped, tag = 'input window, operand 1, single buffered']
    #allocation6 [shape = 's32[1]{0}', space=sflag, size = 0x4, scoped, tag = 'scoped memory for tpu_custom_call.1']
    #allocation7 [shape = 'u8[26624]{0}', space=vmem, size = 0x6800, scoped, tag = 'input window, operand 2, single buffered']
    #allocation8 [shape = 'u8[2048]{0}', space=vmem, size = 0x800, scoped, tag = 'output window, operand 0, single buffered']
    %8 = vsyncpa [#allocation3], 0
    %9 = vsyncpa [#allocation6], 0
    %10 = vsyncpa [#allocation4], 0
    // Predicated region
    $region2: #{tpu_custom_call.1} parent=1 // pred_check
      _
    $region3: #{tpu_custom_call.1} parent=1 // pred_check_branch
      %12 = sbr.rel (0) target = $region5
    $region4: #{tpu_custom_call.1} parent=1 // pred_region
      %s14 = ssub.s32 64, 64
      %15 = vsyncadd [#allocation3], %s14
      %s17 = sshll.u32 [#allocation2], 4
      %s18 = int_to_ptr.vmem [resolvable:$true] %s17
      %20 = dma.hbm_to_vmem [thread:$0]  %s0, 64, %s18, [#allocation3]
    $region5: #{tpu_custom_call.1} parent=1 // pred_fallthru
      _
    // Predicated region
    $region6: #{tpu_custom_call.1} parent=1 // pred_check
      _
    $region7: #{tpu_custom_call.1} parent=1 // pred_check_branch
      %22 = sbr.rel (0) target = $region9
    $region8: #{tpu_custom_call.1} parent=1 // pred_region
      %s24 = ssub.s32 9216, 9216
      %25 = vsyncadd [#allocation6], %s24
      %s26 = sshll.u32 [#allocation5], 4
      %s27 = int_to_ptr.vmem [resolvable:$true] %s26
      %32 = dma.hbm_to_vmem [thread:$0]  %s1, 9216, %s27, [#allocation6], 128, 128, 8
    $region9: #{tpu_custom_call.1} parent=1 // pred_fallthru
      _
    // Predicated region
    $region10: #{tpu_custom_call.1} parent=1 // pred_check
      _
    $region11: #{tpu_custom_call.1} parent=1 // pred_check_branch
      %34 = sbr.rel (0) target = $region13
    $region12: #{tpu_custom_call.1} parent=1 // pred_region
      %s36 = ssub.s32 832, 832
      %37 = vsyncadd [#allocation6], %s36
      %s38 = sshll.u32 [#allocation7], 4
      %s39 = int_to_ptr.vmem [resolvable:$true] %s38
      %44 = dma.hbm_to_vmem [thread:$0]  %s2, 832, %s39, [#allocation6], 64, 64, 4
    $region13: #{tpu_custom_call.1} parent=1 // pred_fallthru
      _
    // Predicated region
    $region14: #{tpu_custom_call.1} parent=1 // pred_check
      _
    $region15: #{tpu_custom_call.1} parent=1 // pred_check_branch
      %46 = sbr.rel (0) target = $region17
    $region16: #{tpu_custom_call.1} parent=1 // pred_region
      %47 = dma.done [#allocation3], 64
    $region17: #{tpu_custom_call.1} parent=1 // pred_fallthru
      _
    // Predicated region
    $region18: #{tpu_custom_call.1} parent=1 // pred_check
      _
    $region19: #{tpu_custom_call.1} parent=1 // pred_check_branch
      %49 = sbr.rel (0) target = $region21
    $region20: #{tpu_custom_call.1} parent=1 // pred_region
      %50 = dma.done [#allocation6], 9216
    $region21: #{tpu_custom_call.1} parent=1 // pred_fallthru
      _
    // Predicated region
    $region22: #{tpu_custom_call.1} parent=1 // pred_check
      _
    $region23: #{tpu_custom_call.1} parent=1 // pred_check_branch
      %52 = sbr.rel (0) target = $region25
    $region24: #{tpu_custom_call.1} parent=1 // pred_region
      %53 = dma.done [#allocation6], 832
    $region25: #{tpu_custom_call.1} parent=1 // pred_fallthru
      _
    %v54 = vld [vmem:[#allocation2] sm:$0x1]
    %v55 = vld [vmem:[#allocation2 + $0x1] sm:$0x1]
    %v56 = vld [vmem:[#allocation2 + $0x2] sm:$0x1]
    %v57 = vld [vmem:[#allocation2 + $0x3] sm:$0x1]
    %v58 = vlaneseq
    %v59 = vshrl.u32 %v58, 7
    %v60 = vsub.s32 0, %v59
    %v61 = vrot.slane %v54, %v60
    %v62 = vlaneseq
    %v63 = vshrl.u32 %v62, 7
    %v64 = vsub.s32 0, %v63
    %v65 = vrot.slane %v55, %v64
    %v66 = vlaneseq
    %v67 = vshrl.u32 %v66, 7
    %v68 = vsub.s32 0, %v67
    %v69 = vrot.slane %v56, %v68
    %v70 = vlaneseq
    %v71 = vshrl.u32 %v70, 7
    %v72 = vsub.s32 0, %v71
    %v73 = vrot.slane %v57, %v72
    %s74 = scalar_lea.vmem [#allocation7], 40
    %v75 = vld [vmem:[%s74] sm:$0xf]
    %v76 = vld [vmem:[#allocation7] sm:$0xf]
    %v77 = vmul.f32 %v76, %v61
    %v78 = vadd.f32 %v75, %v77
    %s79 = scalar_lea.vmem [#allocation7], 4
    %v80 = vld [vmem:[%s79] sm:$0xf]
    %v81 = vmul.f32 %v80, %v65
    %v82 = vadd.f32 %v78, %v81
    %s83 = scalar_lea.vmem [#allocation7], 8
    %v84 = vld [vmem:[%s83] sm:$0xf]
    %v85 = vmul.f32 %v84, %v69
    %v86 = vadd.f32 %v82, %v85
    %s87 = scalar_lea.vmem [#allocation7], 12
    %v88 = vld [vmem:[%s87] sm:$0xf]
    %v89 = vmul.f32 %v88, %v73
    %v90 = vadd.f32 %v86, %v89
    %v91 = vld [vmem:[#allocation5] sm:$0xff]
    %v92 = vld [vmem:[#allocation5 + $0x8] sm:$0xff]
    %s93 = scalar_lea.vmem [#allocation5], 96
    %v94 = vld [vmem:[%s93] sm:$0xff]
    %v95 = vld [vmem:[%s93 + $0x8] sm:$0xff]
    %s96 = scalar_lea.vmem [#allocation5], 192
    %v97 = vld [vmem:[%s96] sm:$0xff]
    %v98 = vld [vmem:[%s96 + $0x8] sm:$0xff]
    %s99 = scalar_lea.vmem [#allocation5], 288
    %v100 = vld [vmem:[%s99] sm:$0xff]
    %v101 = vld [vmem:[%s99 + $0x8] sm:$0xff]
    %s102 = scalar_lea.vmem [#allocation5], 384
    %v103 = vld [vmem:[%s102] sm:$0xff]
    %v104 = vld [vmem:[%s102 + $0x8] sm:$0xff]
    %s105 = scalar_lea.vmem [#allocation5], 480
    %v106 = vld [vmem:[%s105] sm:$0xff]
    %v107 = vld [vmem:[%s105 + $0x8] sm:$0xff]
    %v108 = vmul.f32 %v91, %v61
    %v109 = vmul.f32 %v92, %v61
    %v110 = vmul.f32 %v94, %v65
    %v111 = vmul.f32 %v95, %v65
    %v112 = vadd.f32 %v108, %v110
    %v113 = vadd.f32 %v109, %v111
    %v114 = vadd.f32 %v112, %v97
    %v115 = vadd.f32 %v113, %v98
    %v116 = vadd.f32 %v114, %v115
    %v117 = vrot.slane %v116, 4
    %v118 = vadd.f32 %v116, %v117
    %v119 = vrot.slane %v118, 2
    %v120 = vadd.f32 %v118, %v119
    %v121 = vrot.slane %v120, 1
    %v122 = vadd.f32 %v120, %v121
    %v123 = vmul.f32 %v122, 0.0625
    %v124 = vmul.f32 %v114, %v114
    %v125 = vmul.f32 %v115, %v115
    %v126 = vadd.f32 %v124, %v125
    %v127 = vrot.slane %v126, 4
    %v128 = vadd.f32 %v126, %v127
    %v129 = vrot.slane %v128, 2
    %v130 = vadd.f32 %v128, %v129
    %v131 = vrot.slane %v130, 1
    %v132 = vadd.f32 %v130, %v131
    %v133 = vmul.f32 %v132, 0.0625
    %v134 = vmul.f32 %v123, %v123
    %v135 = vsub.f32 %v133, %v134
    %v136 = vadd.f32 %v135, 1e-05
    %v137 = vrsqrt.pop %v136
    %v138 = vsub.f32 %v114, %v123
    %v139 = vsub.f32 %v115, %v123
    %v140 = vmul.f32 %v100, %v137
    %v141 = vmul.f32 %v101, %v137
    %v142 = vmul.f32 %v138, %v140
    %v143 = vmul.f32 %v139, %v141
    %v144 = vadd.f32 %v142, %v103
    %v145 = vadd.f32 %v143, %v104
    %v146 = vmax.f32 %v144, 0.0
    %v147 = vmax.f32 %v145, 0.0
    %v148 = vmul.f32 %v146, %v106
    %v149 = vmul.f32 %v147, %v107
    %v150 = vadd.f32 %v148, %v149
    %v151 = vrot.slane %v150, 4
    %v152 = vadd.f32 %v150, %v151
    %v153 = vrot.slane %v152, 2
    %v154 = vadd.f32 %v152, %v153
    %v155 = vrot.slane %v154, 1
    %v156 = vadd.f32 %v154, %v155
    %s157 = scalar_lea.vmem [#allocation7], 16
    %v158 = vld [vmem:[%s157] sm:$0xf]
    %v159 = vmul.f32 %v158, %v156
    %v160 = vadd.f32 %v90, %v159
    %s161 = scalar_lea.vmem [#allocation5], 16
    %v162 = vld [vmem:[%s161] sm:$0xff]
    %v163 = vld [vmem:[%s161 + $0x8] sm:$0xff]
    %s164 = scalar_lea.vmem [#allocation5], 112
    %v165 = vld [vmem:[%s164] sm:$0xff]
    %v166 = vld [vmem:[%s164 + $0x8] sm:$0xff]
    %s167 = scalar_lea.vmem [#allocation5], 208
    %v168 = vld [vmem:[%s167] sm:$0xff]
    %v169 = vld [vmem:[%s167 + $0x8] sm:$0xff]
    %s170 = scalar_lea.vmem [#allocation5], 304
    %v171 = vld [vmem:[%s170] sm:$0xff]
    %v172 = vld [vmem:[%s170 + $0x8] sm:$0xff]
    %s173 = scalar_lea.vmem [#allocation5], 400
    %v174 = vld [vmem:[%s173] sm:$0xff]
    %v175 = vld [vmem:[%s173 + $0x8] sm:$0xff]
    %s176 = scalar_lea.vmem [#allocation5], 496
    %v177 = vld [vmem:[%s176] sm:$0xff]
    %v178 = vld [vmem:[%s176 + $0x8] sm:$0xff]
    %v179 = vmul.f32 %v162, %v61
    %v180 = vmul.f32 %v163, %v61
    %v181 = vmul.f32 %v165, %v69
    %v182 = vmul.f32 %v166, %v69
    %v183 = vadd.f32 %v179, %v181
    %v184 = vadd.f32 %v180, %v182
    %v185 = vadd.f32 %v183, %v168
    %v186 = vadd.f32 %v184, %v169
    %v187 = vadd.f32 %v185, %v186
    %v188 = vrot.slane %v187, 4
    %v189 = vadd.f32 %v187, %v188
    %v190 = vrot.slane %v189, 2
    %v191 = vadd.f32 %v189, %v190
    %v192 = vrot.slane %v191, 1
    %v193 = vadd.f32 %v191, %v192
    %v194 = vmul.f32 %v193, 0.0625
    %v195 = vmul.f32 %v185, %v185
    %v196 = vmul.f32 %v186, %v186
    %v197 = vadd.f32 %v195, %v196
    %v198 = vrot.slane %v197, 4
    %v199 = vadd.f32 %v197, %v198
    %v200 = vrot.slane %v199, 2
    %v201 = vadd.f32 %v199, %v200
    %v202 = vrot.slane %v201, 1
    %v203 = vadd.f32 %v201, %v202
    %v204 = vmul.f32 %v203, 0.0625
    %v205 = vmul.f32 %v194, %v194
    %v206 = vsub.f32 %v204, %v205
    %v207 = vadd.f32 %v206, 1e-05
    %v208 = vrsqrt.pop %v207
    %v209 = vsub.f32 %v185, %v194
    %v210 = vsub.f32 %v186, %v194
    %v211 = vmul.f32 %v171, %v208
    %v212 = vmul.f32 %v172, %v208
    %v213 = vmul.f32 %v209, %v211
    %v214 = vmul.f32 %v210, %v212
    %v215 = vadd.f32 %v213, %v174
    %v216 = vadd.f32 %v214, %v175
    %v217 = vmax.f32 %v215, 0.0
    %v218 = vmax.f32 %v216, 0.0
    %v219 = vmul.f32 %v217, %v177
    %v220 = vmul.f32 %v218, %v178
    %v221 = vadd.f32 %v219, %v220
    %v222 = vrot.slane %v221, 4
    %v223 = vadd.f32 %v221, %v222
    %v224 = vrot.slane %v223, 2
    %v225 = vadd.f32 %v223, %v224
    %v226 = vrot.slane %v225, 1
    %v227 = vadd.f32 %v225, %v226
    %s228 = scalar_lea.vmem [#allocation7], 20
    %v229 = vld [vmem:[%s228] sm:$0xf]
    %v230 = vmul.f32 %v229, %v227
    %v231 = vadd.f32 %v160, %v230
    %s232 = scalar_lea.vmem [#allocation5], 32
    %v233 = vld [vmem:[%s232] sm:$0xff]
    %v234 = vld [vmem:[%s232 + $0x8] sm:$0xff]
    %s235 = scalar_lea.vmem [#allocation5], 128
    %v236 = vld [vmem:[%s235] sm:$0xff]
    %v237 = vld [vmem:[%s235 + $0x8] sm:$0xff]
    %s238 = scalar_lea.vmem [#allocation5], 224
    %v239 = vld [vmem:[%s238] sm:$0xff]
    %v240 = vld [vmem:[%s238 + $0x8] sm:$0xff]
    %s241 = scalar_lea.vmem [#allocation5], 320
    %v242 = vld [vmem:[%s241] sm:$0xff]
    %v243 = vld [vmem:[%s241 + $0x8] sm:$0xff]
    %s244 = scalar_lea.vmem [#allocation5], 416
    %v245 = vld [vmem:[%s244] sm:$0xff]
    %v246 = vld [vmem:[%s244 + $0x8] sm:$0xff]
    %s247 = scalar_lea.vmem [#allocation5], 512
    %v248 = vld [vmem:[%s247] sm:$0xff]
    %v249 = vld [vmem:[%s247 + $0x8] sm:$0xff]
    %v250 = vmul.f32 %v233, %v61
    %v251 = vmul.f32 %v234, %v61
    %v252 = vmul.f32 %v236, %v73
    %v253 = vmul.f32 %v237, %v73
    %v254 = vadd.f32 %v250, %v252
    %v255 = vadd.f32 %v251, %v253
    %v256 = vadd.f32 %v254, %v239
    %v257 = vadd.f32 %v255, %v240
    %v258 = vadd.f32 %v256, %v257
    %v259 = vrot.slane %v258, 4
    %v260 = vadd.f32 %v258, %v259
    %v261 = vrot.slane %v260, 2
    %v262 = vadd.f32 %v260, %v261
    %v263 = vrot.slane %v262, 1
    %v264 = vadd.f32 %v262, %v263
    %v265 = vmul.f32 %v264, 0.0625
    %v266 = vmul.f32 %v256, %v256
    %v267 = vmul.f32 %v257, %v257
    %v268 = vadd.f32 %v266, %v267
    %v269 = vrot.slane %v268, 4
    %v270 = vadd.f32 %v268, %v269
    %v271 = vrot.slane %v270, 2
    %v272 = vadd.f32 %v270, %v271
    %v273 = vrot.slane %v272, 1
    %v274 = vadd.f32 %v272, %v273
    %v275 = vmul.f32 %v274, 0.0625
    %v276 = vmul.f32 %v265, %v265
    %v277 = vsub.f32 %v275, %v276
    %v278 = vadd.f32 %v277, 1e-05
    %v279 = vrsqrt.pop %v278
    %v280 = vsub.f32 %v256, %v265
    %v281 = vsub.f32 %v257, %v265
    %v282 = vmul.f32 %v242, %v279
    %v283 = vmul.f32 %v243, %v279
    %v284 = vmul.f32 %v280, %v282
    %v285 = vmul.f32 %v281, %v283
    %v286 = vadd.f32 %v284, %v245
    %v287 = vadd.f32 %v285, %v246
    %v288 = vmax.f32 %v286, 0.0
    %v289 = vmax.f32 %v287, 0.0
    %v290 = vmul.f32 %v288, %v248
    %v291 = vmul.f32 %v289, %v249
    %v292 = vadd.f32 %v290, %v291
    %v293 = vrot.slane %v292, 4
    %v294 = vadd.f32 %v292, %v293
    %v295 = vrot.slane %v294, 2
    %v296 = vadd.f32 %v294, %v295
    %v297 = vrot.slane %v296, 1
    %v298 = vadd.f32 %v296, %v297
    %s299 = scalar_lea.vmem [#allocation7], 24
    %v300 = vld [vmem:[%s299] sm:$0xf]
    %v301 = vmul.f32 %v300, %v298
    %v302 = vadd.f32 %v231, %v301
    %s303 = scalar_lea.vmem [#allocation5], 48
    %v304 = vld [vmem:[%s303] sm:$0xff]
    %v305 = vld [vmem:[%s303 + $0x8] sm:$0xff]
    %s306 = scalar_lea.vmem [#allocation5], 144
    %v307 = vld [vmem:[%s306] sm:$0xff]
    %v308 = vld [vmem:[%s306 + $0x8] sm:$0xff]
    %s309 = scalar_lea.vmem [#allocation5], 240
    %v310 = vld [vmem:[%s309] sm:$0xff]
    %v311 = vld [vmem:[%s309 + $0x8] sm:$0xff]
    %s312 = scalar_lea.vmem [#allocation5], 336
    %v313 = vld [vmem:[%s312] sm:$0xff]
    %v314 = vld [vmem:[%s312 + $0x8] sm:$0xff]
    %s315 = scalar_lea.vmem [#allocation5], 432
    %v316 = vld [vmem:[%s315] sm:$0xff]
    %v317 = vld [vmem:[%s315 + $0x8] sm:$0xff]
    %s318 = scalar_lea.vmem [#allocation5], 528
    %v319 = vld [vmem:[%s318] sm:$0xff]
    %v320 = vld [vmem:[%s318 + $0x8] sm:$0xff]
    %v321 = vmul.f32 %v304, %v65
    %v322 = vmul.f32 %v305, %v65
    %v323 = vmul.f32 %v307, %v69
    %v324 = vmul.f32 %v308, %v69
    %v325 = vadd.f32 %v321, %v323
    %v326 = vadd.f32 %v322, %v324
    %v327 = vadd.f32 %v325, %v310
    %v328 = vadd.f32 %v326, %v311
    %v329 = vadd.f32 %v327, %v328
    %v330 = vrot.slane %v329, 4
    %v331 = vadd.f32 %v329, %v330
    %v332 = vrot.slane %v331, 2
    %v333 = vadd.f32 %v331, %v332
    %v334 = vrot.slane %v333, 1
    %v335 = vadd.f32 %v333, %v334
    %v336 = vmul.f32 %v335, 0.0625
    %v337 = vmul.f32 %v327, %v327
    %v338 = vmul.f32 %v328, %v328
    %v339 = vadd.f32 %v337, %v338
    %v340 = vrot.slane %v339, 4
    %v341 = vadd.f32 %v339, %v340
    %v342 = vrot.slane %v341, 2
    %v343 = vadd.f32 %v341, %v342
    %v344 = vrot.slane %v343, 1
    %v345 = vadd.f32 %v343, %v344
    %v346 = vmul.f32 %v345, 0.0625
    %v347 = vmul.f32 %v336, %v336
    %v348 = vsub.f32 %v346, %v347
    %v349 = vadd.f32 %v348, 1e-05
    %v350 = vrsqrt.pop %v349
    %v351 = vsub.f32 %v327, %v336
    %v352 = vsub.f32 %v328, %v336
    %v353 = vmul.f32 %v313, %v350
    %v354 = vmul.f32 %v314, %v350
    %v355 = vmul.f32 %v351, %v353
    %v356 = vmul.f32 %v352, %v354
    %v357 = vadd.f32 %v355, %v316
    %v358 = vadd.f32 %v356, %v317
    %v359 = vmax.f32 %v357, 0.0
    %v360 = vmax.f32 %v358, 0.0
    %v361 = vmul.f32 %v359, %v319
    %v362 = vmul.f32 %v360, %v320
    %v363 = vadd.f32 %v361, %v362
    %v364 = vrot.slane %v363, 4
    %v365 = vadd.f32 %v363, %v364
    %v366 = vrot.slane %v365, 2
    %v367 = vadd.f32 %v365, %v366
    %v368 = vrot.slane %v367, 1
    %v369 = vadd.f32 %v367, %v368
    %s370 = scalar_lea.vmem [#allocation7], 28
    %v371 = vld [vmem:[%s370] sm:$0xf]
    %v372 = vmul.f32 %v371, %v369
    %v373 = vadd.f32 %v302, %v372
    %s374 = scalar_lea.vmem [#allocation5], 64
    %v375 = vld [vmem:[%s374] sm:$0xff]
    %v376 = vld [vmem:[%s374 + $0x8] sm:$0xff]
    %s377 = scalar_lea.vmem [#allocation5], 160
    %v378 = vld [vmem:[%s377] sm:$0xff]
    %v379 = vld [vmem:[%s377 + $0x8] sm:$0xff]
    %s380 = scalar_lea.vmem [#allocation5], 256
    %v381 = vld [vmem:[%s380] sm:$0xff]
    %v382 = vld [vmem:[%s380 + $0x8] sm:$0xff]
    %s383 = scalar_lea.vmem [#allocation5], 352
    %v384 = vld [vmem:[%s383] sm:$0xff]
    %v385 = vld [vmem:[%s383 + $0x8] sm:$0xff]
    %s386 = scalar_lea.vmem [#allocation5], 448
    %v387 = vld [vmem:[%s386] sm:$0xff]
    %v388 = vld [vmem:[%s386 + $0x8] sm:$0xff]
    %s389 = scalar_lea.vmem [#allocation5], 544
    %v390 = vld [vmem:[%s389] sm:$0xff]
    %v391 = vld [vmem:[%s389 + $0x8] sm:$0xff]
    %v392 = vmul.f32 %v375, %v65
    %v393 = vmul.f32 %v376, %v65
    %v394 = vmul.f32 %v378, %v73
    %v395 = vmul.f32 %v379, %v73
    %v396 = vadd.f32 %v392, %v394
    %v397 = vadd.f32 %v393, %v395
    %v398 = vadd.f32 %v396, %v381
    %v399 = vadd.f32 %v397, %v382
    %v400 = vadd.f32 %v398, %v399
    %v401 = vrot.slane %v400, 4
    %v402 = vadd.f32 %v400, %v401
    %v403 = vrot.slane %v402, 2
    %v404 = vadd.f32 %v402, %v403
    %v405 = vrot.slane %v404, 1
    %v406 = vadd.f32 %v404, %v405
    %v407 = vmul.f32 %v406, 0.0625
    %v408 = vmul.f32 %v398, %v398
    %v409 = vmul.f32 %v399, %v399
    %v410 = vadd.f32 %v408, %v409
    %v411 = vrot.slane %v410, 4
    %v412 = vadd.f32 %v410, %v411
    %v413 = vrot.slane %v412, 2
    %v414 = vadd.f32 %v412, %v413
    %v415 = vrot.slane %v414, 1
    %v416 = vadd.f32 %v414, %v415
    %v417 = vmul.f32 %v416, 0.0625
    %v418 = vmul.f32 %v407, %v407
    %v419 = vsub.f32 %v417, %v418
    %v420 = vadd.f32 %v419, 1e-05
    %v421 = vrsqrt.pop %v420
    %v422 = vsub.f32 %v398, %v407
    %v423 = vsub.f32 %v399, %v407
    %v424 = vmul.f32 %v384, %v421
    %v425 = vmul.f32 %v385, %v421
    %v426 = vmul.f32 %v422, %v424
    %v427 = vmul.f32 %v423, %v425
    %v428 = vadd.f32 %v426, %v387
    %v429 = vadd.f32 %v427, %v388
    %v430 = vmax.f32 %v428, 0.0
    %v431 = vmax.f32 %v429, 0.0
    %v432 = vmul.f32 %v430, %v390
    %v433 = vmul.f32 %v431, %v391
    %v434 = vadd.f32 %v432, %v433
    %v435 = vrot.slane %v434, 4
    %v436 = vadd.f32 %v434, %v435
    %v437 = vrot.slane %v436, 2
    %v438 = vadd.f32 %v436, %v437
    %v439 = vrot.slane %v438, 1
    %v440 = vadd.f32 %v438, %v439
    %s441 = scalar_lea.vmem [#allocation7], 32
    %v442 = vld [vmem:[%s441] sm:$0xf]
    %v443 = vmul.f32 %v442, %v440
    %v444 = vadd.f32 %v373, %v443
    %s445 = scalar_lea.vmem [#allocation5], 80
    %v446 = vld [vmem:[%s445] sm:$0xff]
    %v447 = vld [vmem:[%s445 + $0x8] sm:$0xff]
    %s448 = scalar_lea.vmem [#allocation5], 176
    %v449 = vld [vmem:[%s448] sm:$0xff]
    %v450 = vld [vmem:[%s448 + $0x8] sm:$0xff]
    %s451 = scalar_lea.vmem [#allocation5], 272
    %v452 = vld [vmem:[%s451] sm:$0xff]
    %v453 = vld [vmem:[%s451 + $0x8] sm:$0xff]
    %s454 = scalar_lea.vmem [#allocation5], 368
    %v455 = vld [vmem:[%s454] sm:$0xff]
    %v456 = vld [vmem:[%s454 + $0x8] sm:$0xff]
    %s457 = scalar_lea.vmem [#allocation5], 464
    %v458 = vld [vmem:[%s457] sm:$0xff]
    %v459 = vld [vmem:[%s457 + $0x8] sm:$0xff]
    %s460 = scalar_lea.vmem [#allocation5], 560
    %v461 = vld [vmem:[%s460] sm:$0xff]
    %v462 = vld [vmem:[%s460 + $0x8] sm:$0xff]
    %v463 = vmul.f32 %v446, %v69
    %v464 = vmul.f32 %v447, %v69
    %v465 = vmul.f32 %v449, %v73
    %v466 = vmul.f32 %v450, %v73
    %v467 = vadd.f32 %v463, %v465
    %v468 = vadd.f32 %v464, %v466
    %v469 = vadd.f32 %v467, %v452
    %v470 = vadd.f32 %v468, %v453
    %v471 = vadd.f32 %v469, %v470
    %v472 = vrot.slane %v471, 4
    %v473 = vadd.f32 %v471, %v472
    %v474 = vrot.slane %v473, 2
    %v475 = vadd.f32 %v473, %v474
    %v476 = vrot.slane %v475, 1
    %v477 = vadd.f32 %v475, %v476
    %v478 = vmul.f32 %v477, 0.0625
    %v479 = vmul.f32 %v469, %v469
    %v480 = vmul.f32 %v470, %v470
    %v481 = vadd.f32 %v479, %v480
    %v482 = vrot.slane %v481, 4
    %v483 = vadd.f32 %v481, %v482
    %v484 = vrot.slane %v483, 2
    %v485 = vadd.f32 %v483, %v484
    %v486 = vrot.slane %v485, 1
    %v487 = vadd.f32 %v485, %v486
    %v488 = vmul.f32 %v487, 0.0625
    %v489 = vmul.f32 %v478, %v478
    %v490 = vsub.f32 %v488, %v489
    %v491 = vadd.f32 %v490, 1e-05
    %v492 = vrsqrt.pop %v491
    %v493 = vsub.f32 %v469, %v478
    %v494 = vsub.f32 %v470, %v478
    %v495 = vmul.f32 %v455, %v492
    %v496 = vmul.f32 %v456, %v492
    %v497 = vmul.f32 %v493, %v495
    %v498 = vmul.f32 %v494, %v496
    %v499 = vadd.f32 %v497, %v458
    %v500 = vadd.f32 %v498, %v459
    %v501 = vmax.f32 %v499, 0.0
    %v502 = vmax.f32 %v500, 0.0
    %v503 = vmul.f32 %v501, %v461
    %v504 = vmul.f32 %v502, %v462
    %v505 = vadd.f32 %v503, %v504
    %v506 = vrot.slane %v505, 4
    %v507 = vadd.f32 %v505, %v506
    %v508 = vrot.slane %v507, 2
    %v509 = vadd.f32 %v507, %v508
    %v510 = vrot.slane %v509, 1
    %v511 = vadd.f32 %v509, %v510
    %s512 = scalar_lea.vmem [#allocation7], 36
    %v513 = vld [vmem:[%s512] sm:$0xf]
    %v514 = vmul.f32 %v513, %v511
    %v515 = vadd.f32 %v444, %v514
    %vm516 = vcmask 1043456
    %v517 = vsel %vm516, %v515, 0.0
    %v518 = vrot.slane %v517, 4
    %v519 = vadd.f32 %v517, %v518
    %v520 = vrot.slane %v519, 2
    %v521 = vadd.f32 %v519, %v520
    %v522 = vrot.slane %v521, 1
    %v523 = vadd.f32 %v521, %v522
    %v524 = vmul.f32 %v523, 0.25
    %v525 = vmul.f32 %v515, %v515
    %v526 = vsel %vm516, %v525, 0.0
    %v527 = vrot.slane %v526, 4
    %v528 = vadd.f32 %v526, %v527
    %v529 = vrot.slane %v528, 2
    %v530 = vadd.f32 %v528, %v529
    %v531 = vrot.slane %v530, 1
    %v532 = vadd.f32 %v530, %v531
    %v533 = vmul.f32 %v532, 0.25
    %v534 = vsub.f32 %v515, %v524
    %v535 = vmul.f32 %v524, %v524
    %v536 = vsub.f32 %v533, %v535
    %v537 = vadd.f32 %v536, 1e-05
    %v538 = vrsqrt.pop %v537
    %v539 = vmul.f32 %v534, %v538
    %s540 = scalar_lea.vmem [#allocation7], 44
    %v541 = vld [vmem:[%s540] sm:$0xf]
    %v542 = vmul.f32 %v539, %v541
    %s543 = scalar_lea.vmem [#allocation7], 48
    %v544 = vld [vmem:[%s543] sm:$0xf]
    %v545 = vadd.f32 %v542, %v544
    %v546 = vtanh.pop %v545
    %547 = vst [vmem:[#allocation8] sm:$0xf] %v546
    // Predicated region
    $region26: #{tpu_custom_call.1} parent=1 // pred_check
      _
    $region27: #{tpu_custom_call.1} parent=1 // pred_check_branch
      %549 = sbr.rel (0) target = $region29
    $region28: #{tpu_custom_call.1} parent=1 // pred_region
      %s551 = ssub.s32 64, 64
      %552 = vsyncadd [#allocation4], %s551
      %s554 = sshll.u32 [#allocation8], 4
      %s555 = int_to_ptr.vmem [resolvable:$true] %s554
      %557 = dma.vmem_to_hbm [thread:$0]  %s555, 64, %s3, [#allocation4]
    $region29: #{tpu_custom_call.1} parent=1 // pred_fallthru
      _
    // Predicated region
    $region30: #{tpu_custom_call.1} parent=1 // pred_check
      _
    $region31: #{tpu_custom_call.1} parent=1 // pred_check_branch
      %559 = sbr.rel (0) target = $region33
    $region32: #{tpu_custom_call.1} parent=1 // pred_region
      %560 = dma.done [#allocation4], 64
    $region33: #{tpu_custom_call.1} parent=1 // pred_fallthru
      _
    %561 = vsyncpa [#allocation3], 1
    %562 = vsyncpa [#allocation6], 1
    %563 = vsyncpa [#allocation4], 1

</llo_original>
